<compile_context>
chip_gen: v7x
topology: tpu7x:2x2x1
jax: 0.10.0
libtpu: 0.0.40
codegen_flags: <defaults>
</compile_context>

<pallas_src>
import jax
import jax.numpy as jnp
from jax.experimental import pallas as pl
from jax.experimental.pallas import tpu as pltpu


def _linear_svm_kernel(xt_ref, w_ref, b_ref, o_ref):
    # xt_ref: [F, TILE_B]  (batch on lanes)
    # w_ref:  [2, F]       (resident)
    # b_ref:  [2, 1]       (resident; threshold already folded in)
    # o_ref:  [2, TILE_B]  (lane-dense output)
    o_ref[...] = (
        jnp.dot(w_ref[...], xt_ref[...], preferred_element_type=jnp.float32)
        + b_ref[...]
    )


def linear_svm_forward(x, weight, bias, threshold=0.0, *, tile_b=2048):
    """Pallas equivalent of LinearSVM.forward.

    x:       [B, n_features]
    weight:  [2, n_features]   (PyTorch nn.Linear layout)
    bias:    [2]
    returns: [B, 2] float32
    """
    B, F = x.shape
    assert tile_b % 128 == 0, "tile_b must be a multiple of 128 (lane width)"

    x = x.astype(jnp.float32)
    w = weight.astype(jnp.float32)                                  # [2, F]
    # Fold "- threshold" into the bias (pure algebra, done once at trace time).
    b_eff = (bias.astype(jnp.float32) - jnp.float32(threshold)).reshape(2, 1)

    # Lane-dense layout: batch on the lane (last) axis.
    x_t = x.T                                                       # [F, B]

    if B <= tile_b:
        # Single grid step; block shape equals the full array dims, so no
        # 128-divisibility requirement on the lane axis.
        tile = B
        b_pad = B
    else:
        tile = tile_b                     # multiple of 128 -> dense lanes
        b_pad = pl.cdiv(B, tile) * tile
        if b_pad != B:
            x_t = jnp.pad(x_t, ((0, 0), (0, b_pad - B)))

    grid = (b_pad // tile,)

    out_t = pl.pallas_call(
        _linear_svm_kernel,
        out_shape=jax.ShapeDtypeStruct((2, b_pad), jnp.float32),
        grid_spec=pltpu.PrefetchScalarGridSpec(
            num_scalar_prefetch=0,
            grid=grid,
            in_specs=[
                pl.BlockSpec((F, tile), lambda i: (0, i)),   # x^T  (streamed)
                pl.BlockSpec((2, F), lambda i: (0, 0)),      # W    (resident)
                pl.BlockSpec((2, 1), lambda i: (0, 0)),      # bias (resident)
            ],
            out_specs=pl.BlockSpec((2, tile), lambda i: (0, i)),
        ),
        compiler_params=pltpu.CompilerParams(
            dimension_semantics=("parallel",)),
    )(x_t, w, b_eff)

    # Back to the PyTorch [B, 2] layout (and drop batch padding).
    return out_t[:, :B].T


if __name__ == "__main__":
    key = jax.random.PRNGKey(0)
    kx, kw, kb, kx2 = jax.random.split(key, 4)

    # Small shapes consistent with the module: n_features = 32, batch = 8.
    B, F = 8, 32
    bound = 1.0 / jnp.sqrt(jnp.float32(F))
    weight = jax.random.uniform(kw, (2, F), jnp.float32, -bound, bound)
    bias = jax.random.uniform(kb, (2,), jnp.float32, -bound, bound)
    threshold = 0.25

    x = jax.random.normal(kx, (B, F), dtype=jnp.float32)
    out = jax.block_until_ready(linear_svm_forward(x, weight, bias, threshold))
    ref = x @ weight.T + bias - threshold
    assert out.shape == (B, 2)
    assert jnp.allclose(out, ref, atol=1e-5, rtol=1e-5)

    # Also exercise the tiled (multi-grid-step, padded-batch) production path
    # with a deliberately small tile.
    B2 = 300
    x2 = jax.random.normal(kx2, (B2, F), dtype=jnp.float32)
    out2 = jax.block_until_ready(
        linear_svm_forward(x2, weight, bias, threshold, tile_b=128))
    ref2 = x2 @ weight.T + bias - threshold
    assert out2.shape == (B2, 2)
    assert jnp.allclose(out2, ref2, atol=1e-5, rtol=1e-5)

    print("KERNEL_OK")
</pallas_src>

<mosaic_0001>
module attributes {stable_mosaic.version = 11 : i64} {
  func.func @_linear_svm_kernel(%arg0: i32, %arg1: memref<32x8xf32, #tpu.memory_space<vmem>>, %arg2: memref<2x32xf32, #tpu.memory_space<vmem>>, %arg3: memref<2x1xf32, #tpu.memory_space<vmem>>, %arg4: memref<2x8xf32, #tpu.memory_space<vmem>>) attributes {dimension_semantics = [#tpu.dimension_semantics<parallel>], iteration_bounds = array<i64: 1>, scalar_prefetch = 0 : i64, scratch_operands = 0 : i64, tpu.core_type = #tpu.core_type<tc>, window_params = [{transform_indices = @transform_0, window_bounds = array<i64: 32, 8>}, {pipeline_mode = #tpu.pipeline_mode<synchronous>, transform_indices = @transform_1, window_bounds = array<i64: 2, 32>}, {pipeline_mode = #tpu.pipeline_mode<synchronous>, transform_indices = @transform_2, window_bounds = array<i64: 2, 1>}, {transform_indices = @transform_3, window_bounds = array<i64: 2, 8>}]} {
    %c0 = arith.constant 0 : index
    %c0_0 = arith.constant 0 : index
    %0 = vector.load %arg2[%c0, %c0_0] : memref<2x32xf32, #tpu.memory_space<vmem>>, vector<2x32xf32>
    %c0_1 = arith.constant 0 : index
    %c0_2 = arith.constant 0 : index
    %1 = vector.load %arg1[%c0_1, %c0_2] : memref<32x8xf32, #tpu.memory_space<vmem>>, vector<32x8xf32>
    %cst = arith.constant dense<0.000000e+00> : vector<2x8xf32>
    %2 = tpu.matmul %0, %1, %cst {dimension_numbers = #tpu.dot_dimension_numbers<[1], [0], [0], [1], [0, 0, 1, 1], [], []>} : vector<2x32xf32>, vector<32x8xf32>, vector<2x8xf32> -> vector<2x8xf32>
    %c0_3 = arith.constant 0 : index
    %c0_4 = arith.constant 0 : index
    %3 = vector.load %arg3[%c0_3, %c0_4] : memref<2x1xf32, #tpu.memory_space<vmem>>, vector<2x1xf32>
    %4 = vector.broadcast %3 : vector<2x1xf32> to vector<2x8xf32>
    %5 = arith.addf %2, %4 : vector<2x8xf32>
    %c0_5 = arith.constant 0 : index
    %c0_6 = arith.constant 0 : index
    %6 = vector.load %arg4[%c0_5, %c0_6] : memref<2x8xf32, #tpu.memory_space<vmem>>, vector<2x8xf32>
    tpu.vector_store %arg4[%c0_5, %c0_6], %5 {strides = array<i32>} : memref<2x8xf32, #tpu.memory_space<vmem>>, vector<2x8xf32>,
    return
  }
  func.func @transform_0(%arg0: i32) -> (i32, i32) {
    %c0_i32 = arith.constant 0 : i32
    %c0_i32_0 = arith.constant 0 : i32
    return %c0_i32, %arg0 : i32, i32
  }
  func.func @transform_1(%arg0: i32) -> (i32, i32) {
    %c0_i32 = arith.constant 0 : i32
    %c0_i32_0 = arith.constant 0 : i32
    %c0_i32_1 = arith.constant 0 : i32
    return %c0_i32, %c0_i32_0 : i32, i32
  }
  func.func @transform_2(%arg0: i32) -> (i32, i32) {
    %c0_i32 = arith.constant 0 : i32
    %c0_i32_0 = arith.constant 0 : i32
    %c0_i32_1 = arith.constant 0 : i32
    return %c0_i32, %c0_i32_0 : i32, i32
  }
  func.func @transform_3(%arg0: i32) -> (i32, i32) {
    %c0_i32 = arith.constant 0 : i32
    %c0_i32_0 = arith.constant 0 : i32
    return %c0_i32, %arg0 : i32, i32
  }
}

</mosaic_0001>

<llo_original>
// kernel: tpu_custom_call.1
$region0: #{tpu_custom_call.1}
  #allocation0 [shape = 'u32[]', space=smem, size = 0x4, offset = 0x4, fixed_abs, tag = 'smem constant byte address 0x4 - core index']
  #allocation1 [shape = 'u32[144,128]{1,0:T(1,128)}', space=vmem, size = 0x12000, scoped, tag = 'internal scratch']
  %s0 = inlined_call_operand.vmem [shape: f32[32,8], index: 0, kind: input, shape index: {}]
  %s1 = inlined_call_operand.vmem [shape: f32[2,32], index: 1, kind: input, shape index: {}]
  %s2 = inlined_call_operand.vmem [shape: f32[2,1], index: 2, kind: input, shape index: {}]
  %s3 = inlined_call_operand.hbm [shape: f32[2,8], index: 3, kind: output, shape index: {}]
  %s4 = sld [smem:[#allocation0]]
  $region22: #{tpu_custom_call.1} parent=0
    _
  %s6 = ssub.s32 1, %s4
  %s7 = scalar_select 0, %s6, %s4
  $region1: #{tpu_custom_call.1} parent=0
    #allocation2 [shape = 'u8[1024]{0}', space=vmem, size = 0x400, scoped, tag = 'output window, operand 0, single buffered']
    #allocation3 [shape = 's32[1]{0}', space=sflag, size = 0x4, scoped, tag = 'scoped memory for tpu_custom_call.1']
    %8 = vsyncpa [#allocation3], 0
    // Predicated region
    $region2: #{tpu_custom_call.1} parent=1 // pred_check
      _
    $region3: #{tpu_custom_call.1} parent=1 // pred_check_branch
      %10 = sbr.rel (0) target = $region5
    $region4: #{tpu_custom_call.1} parent=1 // pred_region
      _
    $region5: #{tpu_custom_call.1} parent=1 // pred_fallthru
      _
    // Predicated region
    $region6: #{tpu_custom_call.1} parent=1 // pred_check
      _
    $region7: #{tpu_custom_call.1} parent=1 // pred_check_branch
      %12 = sbr.rel (0) target = $region9
    $region8: #{tpu_custom_call.1} parent=1 // pred_region
      _
    $region9: #{tpu_custom_call.1} parent=1 // pred_fallthru
      _
    // Predicated region
    $region10: #{tpu_custom_call.1} parent=1 // pred_check
      _
    $region11: #{tpu_custom_call.1} parent=1 // pred_check_branch
      %14 = sbr.rel (0) target = $region13
    $region12: #{tpu_custom_call.1} parent=1 // pred_region
      _
    $region13: #{tpu_custom_call.1} parent=1 // pred_fallthru
      _
    %v15 = vld [vmem:[%s1] sm:$0x3]
    %v16 = vld [vmem:[%s0] sm:$0xff]
    %v17 = vld [vmem:[%s0 + $0x8] sm:$0xff]
    %v18 = vld [vmem:[%s0 + $0x10] sm:$0xff]
    %v19 = vld [vmem:[%s0 + $0x18] sm:$0xff]
    %v20 = vld [vmem:[%s2] sm:$0x3]
    %22 = vset.pattern.permute.xlu0 0
    %23 = vperm.xlu0 %22, %v20
    %v24 = vpop.permute.xlu0 %23
    %vm26 = vcmask 261120
    %v28 = vsel %vm26, %v15, 0
    %30 = vmatprep.subr.mxu0 0.0
    %31 = vmatpush1.msra.mxu0 %v16
    %32 = vmatprep.subr.mxu0 0.0
    %33 = vmatpush1.msra.mxu0 %v17
    %34 = vmatprep.subr.mxu0 0.0
    %35 = vmatpush1.msra.mxu0 %v18
    %36 = vmatprep.subr.mxu0 0.0
    %37 = vmatpush1.msra.mxu0 %v19
    %38 = vmatprep.subr.mxu0 0.0
    %39 = vmatpush1.msra.mxu0 0.0
    %40 = vmatprep.subr.mxu0 0.0
    %41 = vmatpush1.msra.mxu0 0.0
    %42 = vmatprep.subr.mxu0 0.0
    %43 = vmatpush1.msra.mxu0 0.0
    %44 = vmatprep.subr.mxu0 0.0
    %45 = vmatpush1.msra.mxu0 0.0
    %46 = vmatprep.subr.mxu0 0.0
    %47 = vmatpush1.msra.mxu0 0.0
    %48 = vmatprep.subr.mxu0 0.0
    %49 = vmatpush1.msra.mxu0 0.0
    %50 = vmatprep.subr.mxu0 0.0
    %51 = vmatpush1.msra.mxu0 0.0
    %52 = vmatprep.subr.mxu0 0.0
    %53 = vmatpush1.msra.mxu0 0.0
    %54 = vmatprep.subr.mxu0 0.0
    %55 = vmatpush1.msra.mxu0 0.0
    %56 = vmatprep.subr.mxu0 0.0
    %57 = vmatpush1.msra.mxu0 0.0
    %58 = vmatprep.subr.mxu0 0.0
    %59 = vmatpush1.msra.mxu0 0.0
    %60 = vmatprep.subr.mxu0 0.0
    %61 = vmatpush1.msra.mxu0 0.0
    %62 = vmatprep.subr.mxu0 0.0
    %63 = vmatpush1.msra.mxu0 0.0
    %64 = vmatprep.subr.mxu0 0.0
    %65 = vmatpush1.msra.mxu0 0.0
    %66 = vmatprep.subr.mxu0 0.0
    %67 = vmatpush1.msra.mxu0 0.0
    %68 = vmatprep.subr.mxu0 0.0
    %69 = vmatpush1.msra.mxu0 0.0
    %70 = vmatprep.subr.mxu0 0.0
    %71 = vmatpush1.msra.mxu0 0.0
    %72 = vmatprep.subr.mxu0 0.0
    %73 = vmatpush1.msra.mxu0 0.0
    %74 = vmatprep.subr.mxu0 0.0
    %75 = vmatpush1.msra.mxu0 0.0
    %76 = vmatprep.subr.mxu0 0.0
    %77 = vmatpush1.msra.mxu0 0.0
    %78 = vmatprep.subr.mxu0 0.0
    %79 = vmatpush1.msra.mxu0 0.0
    %80 = vmatprep.subr.mxu0 0.0
    %81 = vmatpush1.msra.mxu0 0.0
    %82 = vmatprep.subr.mxu0 0.0
    %83 = vmatpush1.msra.mxu0 0.0
    %84 = vmatprep.subr.mxu0 0.0
    %85 = vmatpush1.msra.mxu0 0.0
    %86 = vmatprep.subr.mxu0 0.0
    %87 = vmatpush1.msra.mxu0 0.0
    %88 = vmatprep.subr.mxu0 0.0
    %89 = vmatpush1.msra.mxu0 0.0
    %90 = vmatprep.subr.mxu0 0.0
    %91 = vmatpush1.msra.mxu0 0.0
    %92 = vmatprep.subr.mxu0 0.0
    %93 = vmatpush1.msra.mxu0 0.0
    %94 = vmatprep.mubr.f32.mxu0 0.0
    %95 = vmatmul.mubr.f32.gmra.mrb[0].mxu0 %v28
    %v96 = vpop.f32.mrb[0].mxu0
    %v97 = vadd.f32 %v24, %v96
    %v98 = vpop.f32.mrb[0].mxu0
    %99 = vdwg.mxu0
    %vm100 = vcmask 58368
    %101 = vst.msk [vmem:[#allocation2] sm:$0x3] %vm100, %v97
    // Predicated region
    $region14: #{tpu_custom_call.1} parent=1 // pred_check
      _
    $region15: #{tpu_custom_call.1} parent=1 // pred_check_branch
      %103 = sbr.rel (0) target = $region17
    $region16: #{tpu_custom_call.1} parent=1 // pred_region
      %s105 = ssub.s32 32, 32
      %106 = vsyncadd [#allocation3], %s105
      %s108 = sshll.u32 [#allocation2], 4
      %s109 = int_to_ptr.vmem [resolvable:$true] %s108
      %111 = dma.vmem_to_hbm [thread:$0]  %s109, 32, %s3, [#allocation3]
    $region17: #{tpu_custom_call.1} parent=1 // pred_fallthru
      _
    // Predicated region
    $region18: #{tpu_custom_call.1} parent=1 // pred_check
      _
    $region19: #{tpu_custom_call.1} parent=1 // pred_check_branch
      %113 = sbr.rel (0) target = $region21
    $region20: #{tpu_custom_call.1} parent=1 // pred_region
      %114 = dma.done [#allocation3], 32
    $region21: #{tpu_custom_call.1} parent=1 // pred_fallthru
      _
    %115 = vsyncpa [#allocation3], 1

</llo_original>
